<compile_context>
chip_gen: v5e
topology: v5e:2x2
jax: 0.10.0
libtpu: 0.0.40
codegen_flags: <defaults>
</compile_context>

<pallas_src>
import jax
import jax.numpy as jnp
import numpy as np
from jax import lax
from jax.experimental import pallas as pl
from jax.experimental.pallas import tpu as pltpu

# Shapes implied by the module: Linear(128, 2) after MaxPool(2,2) over 32 channels
# => 32 * 2 * 2 = 128 => input spatial must be 4x4 with 64 input channels.
B, CIN, H, W = 2, 64, 4, 4
COUT = 32
KH = KW = 3
EPS = 1e-5
POOL_H = POOL_W = 2             # spatial size after 2x2 / stride-2 max pool
NFEAT = COUT * POOL_H * POOL_W  # 128
NOUT = 2


def _decoder_fused_kernel(x_ref, m_ref, b_ref, wfc_ref, bfc_ref, out_ref):
    """Fused conv3x3 + (folded)BN + ReLU + 2x2 maxpool + Linear.

    x_ref:   [B*H, KH*W*CIN] = [8, 768]   bf16; row = h*B + b,
             col = kh*(W*CIN) + w'*CIN + ci holds x[b, ci, h+kh-1, w'] (0 off-edge)
    m_ref:   [KH*W*CIN, W*COUT] = [768, 128]  bf16 stacked banded, BN-folded weights
    b_ref:   [1, W*COUT] = [1, 128]           f32 BN-folded bias, tiled over w
    wfc_ref: [NFEAT, NOUT] = [128, 2]         f32 FC weight permuted to (i, j, c) order
    bfc_ref: [1, NOUT]
    out_ref: [B, NOUT] = [2, 2]
    """
    # --- 3x3 'same' conv as a single stacked banded matmul. ---
    acc = jnp.dot(x_ref[...], m_ref[...],
                  preferred_element_type=jnp.float32)       # [B*H, W*COUT] = [8, 128]

    # Folded BatchNorm bias + ReLU.  Dropout(0.3) is the identity in eval mode.
    y = jnp.maximum(acc + b_ref[...], 0.0)

    # --- 2x2 / stride-2 max pool, vectorized over batch (sublanes) & channels (lanes). ---
    # Rows r = h*B + b: h=0 -> [0:B), h=1 -> [B:2B), h=2 -> [2B:3B), h=3 -> [3B:4B).
    v0 = jnp.maximum(y[0:B, :],         y[B:2 * B, :])       # pool rows i=0 (h=0,1)  [B, 128]
    v1 = jnp.maximum(y[2 * B:3 * B, :], y[3 * B:4 * B, :])   # pool rows i=1 (h=2,3)  [B, 128]
    # Cols = w*COUT + c: w-pairs (0,1) -> j=0 and (2,3) -> j=1.
    c = COUT
    flat = jnp.concatenate([
        jnp.maximum(v0[:, 0:c],         v0[:, c:2 * c]),         # (i=0, j=0)
        jnp.maximum(v0[:, 2 * c:3 * c], v0[:, 3 * c:4 * c]),     # (i=0, j=1)
        jnp.maximum(v1[:, 0:c],         v1[:, c:2 * c]),         # (i=1, j=0)
        jnp.maximum(v1[:, 2 * c:3 * c], v1[:, 3 * c:4 * c]),     # (i=1, j=1)
    ], axis=1)                                               # [B, 128], col = i*64 + j*32 + c

    # --- Linear(128 -> 2) ---
    out_ref[...] = jnp.dot(flat, wfc_ref[...],
                           preferred_element_type=jnp.float32) + bfc_ref[...]


def prepare_params(params):
    """One-time host-side prep: fold BN into conv, build the stacked banded conv
    matrix (horizontal padding clipped, bf16), permute the FC weight to the kernel's
    (i, j, c) flatten order."""
    wc, bc = params["conv_w"], params["conv_b"]
    gamma, beta = params["bn_gamma"], params["bn_beta"]
    mean, var = params["bn_mean"], params["bn_var"]
    wfc, bfc = params["fc_w"], params["fc_b"]

    # Fold eval-mode BatchNorm into the conv weight/bias (exact).
    scale = gamma * lax.rsqrt(var + EPS)                     # [COUT]
    w_fold = np.asarray(wc * scale[:, None, None, None])     # [COUT, CIN, KH, KW]
    b_fold = np.asarray((bc - mean) * scale + beta)          # [COUT]

    # Stacked banded matrix M : [KH*W*CIN, W*COUT].  For tap (kh, kw) and output
    # column block w, the input column block is w' = w + kw - 1; taps with w'
    # outside [0, W) are clipped (they would only multiply zero padding).
    m = np.zeros((KH, W * CIN, W * COUT), np.float32)
    for kh in range(KH):
        for w in range(W):
            for kw in range(KW):
                wp = w + kw - 1
                if 0 <= wp < W:
                    m[kh, wp * CIN:(wp + 1) * CIN,
                          w * COUT:(w + 1) * COUT] = w_fold[:, :, kh, kw].T
    m_stacked = jnp.asarray(m.reshape(KH * W * CIN, W * COUT)).astype(jnp.bfloat16)

    bias_row = jnp.asarray(np.tile(b_fold, W).reshape(1, W * COUT), jnp.float32)

    # FC weight [NOUT, 128]; PyTorch flatten of pooled NCHW is (c, i, j).
    # Our flatten order is (i, j, c) -> permute accordingly.
    wfc_mat = (jnp.asarray(wfc).reshape(NOUT, COUT, POOL_H, POOL_W)
                  .transpose(2, 3, 1, 0)                     # (i, j, c, out)
                  .reshape(NFEAT, NOUT)).astype(jnp.float32)
    return {"conv_m": m_stacked, "conv_bias": bias_row,
            "fc_w": wfc_mat, "fc_b": jnp.asarray(bfc).reshape(1, NOUT).astype(jnp.float32)}


def decoder_forward(x_nchw, prep):
    # Glue: NCHW -> (h, b, w, c) rows, then the three row-shifted kernel-row slabs
    # concatenated along K -> one lane-dense bf16 LHS slab [B*H, KH*W*CIN].
    # NOTE: ideally the upstream producer emits this layout directly (fused into its
    # own XLA fusion); here it is one small host-side fusion (~12 KiB) per call.
    xt = jnp.transpose(x_nchw, (2, 0, 3, 1))                 # [H, B, W, CIN]
    xrows = xt.reshape(H * B, W * CIN)                       # [8, 256], row = h*B + b
    zero = jnp.zeros((B, W * CIN), xrows.dtype)
    slab0 = jnp.concatenate([zero, xrows[:(H - 1) * B]], axis=0)   # kh=0: input row h-1
    slab2 = jnp.concatenate([xrows[B:], zero], axis=0)             # kh=2: input row h+1
    x_lhs = jnp.concatenate([slab0, xrows, slab2], axis=1).astype(jnp.bfloat16)  # [8, 768]

    return pl.pallas_call(
        _decoder_fused_kernel,
        out_shape=jax.ShapeDtypeStruct((B, NOUT), jnp.float32),
        in_specs=[pl.BlockSpec(memory_space=pltpu.MemorySpace.VMEM)] * 5,
        out_specs=pl.BlockSpec(memory_space=pltpu.MemorySpace.VMEM),
    )(x_lhs, prep["conv_m"], prep["conv_bias"], prep["fc_w"], prep["fc_b"])


def decoder_reference(x_nchw, params):
    """Pure-JAX f32 reference (NCHW, mirrors the PyTorch forward in eval mode)."""
    conv = lax.conv_general_dilated(
        x_nchw, params["conv_w"], (1, 1), ((1, 1), (1, 1)),
        dimension_numbers=("NCHW", "OIHW", "NCHW"),
        precision=lax.Precision.HIGHEST)
    conv = conv + params["conv_b"][None, :, None, None]
    inv = lax.rsqrt(params["bn_var"] + EPS)
    y = (conv - params["bn_mean"][None, :, None, None]) * inv[None, :, None, None]
    y = y * params["bn_gamma"][None, :, None, None] + params["bn_beta"][None, :, None, None]
    y = jnp.maximum(y, 0.0)
    p = y.reshape(B, COUT, POOL_H, 2, POOL_W, 2).max(axis=(3, 5))   # [B, 32, 2, 2]
    flat = p.reshape(B, NFEAT)                                      # NCHW flatten: (c, i, j)
    return jnp.dot(flat, params["fc_w"].T,
                   precision=lax.Precision.HIGHEST) + params["fc_b"][None, :]


def init_params(key):
    ks = jax.random.split(key, 8)
    return {
        "conv_w": jax.random.normal(ks[0], (COUT, CIN, KH, KW), jnp.float32) * 0.05,
        "conv_b": jax.random.normal(ks[1], (COUT,), jnp.float32) * 0.05,
        "bn_gamma": 1.0 + 0.1 * jax.random.normal(ks[2], (COUT,), jnp.float32),
        "bn_beta": 0.1 * jax.random.normal(ks[3], (COUT,), jnp.float32),
        "bn_mean": 0.1 * jax.random.normal(ks[4], (COUT,), jnp.float32),
        "bn_var": 1.0 + 0.5 * jax.nn.sigmoid(jax.random.normal(ks[5], (COUT,), jnp.float32)),
        "fc_w": jax.random.normal(ks[6], (NOUT, NFEAT), jnp.float32) * 0.05,
        "fc_b": jax.random.normal(ks[7], (NOUT,), jnp.float32) * 0.05,
    }


if __name__ == "__main__":
    key = jax.random.PRNGKey(0)
    pkey, xkey = jax.random.split(key)
    params = init_params(pkey)
    x = jax.random.normal(xkey, (B, CIN, H, W), jnp.float32)   # NCHW, matches PyTorch input

    prep = prepare_params(params)                              # one-time weight prep (host)
    out = jax.jit(decoder_forward)(x, prep)
    out = jax.block_until_ready(out)

    ref = decoder_reference(x, params)
    # bf16 activation/weight inputs with f32 accumulation vs. a true-f32 reference:
    # observed error is a few 1e-3; 2e-2 gives ample margin.
    np.testing.assert_allclose(np.asarray(out), np.asarray(ref), rtol=2e-2, atol=2e-2)

    print("KERNEL_OK")
</pallas_src>

<mosaic_0001>
module attributes {stable_mosaic.version = 11 : i64} {
  func.func @_decoder_fused_kernel(%arg0: memref<8x768xbf16, #tpu.memory_space<vmem>>, %arg1: memref<768x128xbf16, #tpu.memory_space<vmem>>, %arg2: memref<1x128xf32, #tpu.memory_space<vmem>>, %arg3: memref<128x2xf32, #tpu.memory_space<vmem>>, %arg4: memref<1x2xf32, #tpu.memory_space<vmem>>, %arg5: memref<2x2xf32, #tpu.memory_space<vmem>>) attributes {dimension_semantics = [], scalar_prefetch = 0 : i64, scratch_operands = 0 : i64, tpu.core_type = #tpu.core_type<tc>} {
    %c0 = arith.constant 0 : index
    %c0_0 = arith.constant 0 : index
    %0 = vector.load %arg0[%c0, %c0_0] : memref<8x768xbf16, #tpu.memory_space<vmem>>, vector<8x768xbf16>
    %c0_1 = arith.constant 0 : index
    %c0_2 = arith.constant 0 : index
    %1 = vector.load %arg1[%c0_1, %c0_2] : memref<768x128xbf16, #tpu.memory_space<vmem>>, vector<768x128xbf16>
    %cst = arith.constant dense<0.000000e+00> : vector<8x128xf32>
    %2 = tpu.matmul %0, %1, %cst {dimension_numbers = #tpu.dot_dimension_numbers<[1], [0], [0], [1], [0, 0, 1, 1], [], []>} : vector<8x768xbf16>, vector<768x128xbf16>, vector<8x128xf32> -> vector<8x128xf32>
    %c0_3 = arith.constant 0 : index
    %c0_4 = arith.constant 0 : index
    %3 = vector.load %arg2[%c0_3, %c0_4] : memref<1x128xf32, #tpu.memory_space<vmem>>, vector<1x128xf32>
    %4 = vector.broadcast %3 : vector<1x128xf32> to vector<8x128xf32>
    %5 = arith.addf %2, %4 : vector<8x128xf32>
    %cst_5 = arith.constant 0.000000e+00 : f32
    %6 = vector.broadcast %cst_5 : f32 to vector<8x128xf32>
    %7 = arith.maximumf %5, %6 : vector<8x128xf32>
    %8 = vector.extract_strided_slice %7 {offsets = [0, 0], sizes = [2, 128], strides = [1, 1]} : vector<8x128xf32> to vector<2x128xf32>
    %9 = vector.extract_strided_slice %7 {offsets = [2, 0], sizes = [2, 128], strides = [1, 1]} : vector<8x128xf32> to vector<2x128xf32>
    %10 = arith.maximumf %8, %9 : vector<2x128xf32>
    %11 = vector.extract_strided_slice %7 {offsets = [4, 0], sizes = [2, 128], strides = [1, 1]} : vector<8x128xf32> to vector<2x128xf32>
    %12 = vector.extract_strided_slice %7 {offsets = [6, 0], sizes = [2, 128], strides = [1, 1]} : vector<8x128xf32> to vector<2x128xf32>
    %13 = arith.maximumf %11, %12 : vector<2x128xf32>
    %14 = vector.extract_strided_slice %10 {offsets = [0, 0], sizes = [2, 32], strides = [1, 1]} : vector<2x128xf32> to vector<2x32xf32>
    %15 = vector.extract_strided_slice %10 {offsets = [0, 32], sizes = [2, 32], strides = [1, 1]} : vector<2x128xf32> to vector<2x32xf32>
    %16 = arith.maximumf %14, %15 : vector<2x32xf32>
    %17 = vector.extract_strided_slice %10 {offsets = [0, 64], sizes = [2, 32], strides = [1, 1]} : vector<2x128xf32> to vector<2x32xf32>
    %18 = vector.extract_strided_slice %10 {offsets = [0, 96], sizes = [2, 32], strides = [1, 1]} : vector<2x128xf32> to vector<2x32xf32>
    %19 = arith.maximumf %17, %18 : vector<2x32xf32>
    %20 = vector.extract_strided_slice %13 {offsets = [0, 0], sizes = [2, 32], strides = [1, 1]} : vector<2x128xf32> to vector<2x32xf32>
    %21 = vector.extract_strided_slice %13 {offsets = [0, 32], sizes = [2, 32], strides = [1, 1]} : vector<2x128xf32> to vector<2x32xf32>
    %22 = arith.maximumf %20, %21 : vector<2x32xf32>
    %23 = vector.extract_strided_slice %13 {offsets = [0, 64], sizes = [2, 32], strides = [1, 1]} : vector<2x128xf32> to vector<2x32xf32>
    %24 = vector.extract_strided_slice %13 {offsets = [0, 96], sizes = [2, 32], strides = [1, 1]} : vector<2x128xf32> to vector<2x32xf32>
    %25 = arith.maximumf %23, %24 : vector<2x32xf32>
    %26 = tpu.concatenate %16, %19, %22, %25 in 1 : vector<2x32xf32>, vector<2x32xf32>, vector<2x32xf32>, vector<2x32xf32> -> vector<2x128xf32>
    %c0_6 = arith.constant 0 : index
    %c0_7 = arith.constant 0 : index
    %27 = vector.load %arg3[%c0_6, %c0_7] : memref<128x2xf32, #tpu.memory_space<vmem>>, vector<128x2xf32>
    %cst_8 = arith.constant dense<0.000000e+00> : vector<2x2xf32>
    %28 = tpu.matmul %26, %27, %cst_8 {dimension_numbers = #tpu.dot_dimension_numbers<[1], [0], [0], [1], [0, 0, 1, 1], [], []>} : vector<2x128xf32>, vector<128x2xf32>, vector<2x2xf32> -> vector<2x2xf32>
    %c0_9 = arith.constant 0 : index
    %c0_10 = arith.constant 0 : index
    %29 = vector.load %arg4[%c0_9, %c0_10] : memref<1x2xf32, #tpu.memory_space<vmem>>, vector<1x2xf32>
    %30 = vector.broadcast %29 : vector<1x2xf32> to vector<2x2xf32>
    %31 = arith.addf %28, %30 : vector<2x2xf32>
    %c0_11 = arith.constant 0 : index
    %c0_12 = arith.constant 0 : index
    %32 = vector.load %arg5[%c0_11, %c0_12] : memref<2x2xf32, #tpu.memory_space<vmem>>, vector<2x2xf32>
    tpu.vector_store %arg5[%c0_11, %c0_12], %31 {strides = array<i32>} : memref<2x2xf32, #tpu.memory_space<vmem>>, vector<2x2xf32>,
    return
  }
}

</mosaic_0001>

<llo_original>
// kernel: decoder_forward.1
$region0: #{decoder_forward.1}
  #allocation0 [shape = 'u32[]', space=smem, size = 0x4, offset = 0x4, fixed_abs, tag = 'smem constant byte address 0x4 - core index']
  #allocation1 [shape = 'u32[72,128]{1,0:T(1,128)}', space=vmem, size = 0x9000, scoped, tag = 'internal scratch']
  %s0 = inlined_call_operand.vmem [shape: bf16[8,768], index: 0, kind: input, shape index: {}]
  %s1 = inlined_call_operand.hbm [shape: bf16[768,128], index: 1, kind: input, shape index: {}]
  %s2 = inlined_call_operand.vmem [shape: f32[1,128], index: 2, kind: input, shape index: {}]
  %s3 = inlined_call_operand.vmem [shape: f32[128,2], index: 3, kind: input, shape index: {}]
  %s4 = inlined_call_operand.vmem [shape: f32[1,2], index: 4, kind: input, shape index: {}]
  %s5 = inlined_call_operand.hbm [shape: f32[2,2], index: 5, kind: output, shape index: {}]
  %s6 = sld [smem:[#allocation0]]
  $region34: #{decoder_forward.1} parent=0
    _
  %s8 = ssub.s32 1, %s6
  %s9 = scalar_select 0, %s8, %s6
  $region1: #{decoder_forward.1} parent=0
    #allocation2 [shape = 'u8[196608]{0}', space=vmem, size = 0x30000, scoped, tag = 'input window, operand 1, single buffered']
    #allocation3 [shape = 's32[1]{0}', space=sflag, size = 0x4, scoped, tag = 'scoped memory for decoder_forward.1']
    #allocation4 [shape = 's32[1]{0}', space=sflag, size = 0x4, scoped, tag = 'scoped memory for decoder_forward.1']
    #allocation5 [shape = 'u8[1024]{0}', space=vmem, size = 0x400, scoped, tag = 'output window, operand 0, single buffered']
    %10 = vsyncpa [#allocation3], 0
    %11 = vsyncpa [#allocation4], 0
    // Predicated region
    $region2: #{decoder_forward.1} parent=1 // pred_check
      _
    $region3: #{decoder_forward.1} parent=1 // pred_check_branch
      %13 = sbr.rel (0) target = $region5
    $region4: #{decoder_forward.1} parent=1 // pred_region
      _
    $region5: #{decoder_forward.1} parent=1 // pred_fallthru
      _
    // Predicated region
    $region6: #{decoder_forward.1} parent=1 // pred_check
      _
    $region7: #{decoder_forward.1} parent=1 // pred_check_branch
      %15 = sbr.rel (0) target = $region9
    $region8: #{decoder_forward.1} parent=1 // pred_region
      %17 = vsyncadd [#allocation3], 0
      %s18 = sshll.u32 %s1, 4
      %s19 = int_to_ptr.hbm [resolvable:$true] %s18
      %s20 = sshll.u32 [#allocation2], 4
      %s21 = int_to_ptr.vmem [resolvable:$true] %s20
      %26 = dma.hbm_to_vmem [thread:$0]  %s19, 6144, %s21, [#allocation3], 64, 64, 4
    $region9: #{decoder_forward.1} parent=1 // pred_fallthru
      _
    // Predicated region
    $region10: #{decoder_forward.1} parent=1 // pred_check
      _
    $region11: #{decoder_forward.1} parent=1 // pred_check_branch
      %28 = sbr.rel (0) target = $region13
    $region12: #{decoder_forward.1} parent=1 // pred_region
      _
    $region13: #{decoder_forward.1} parent=1 // pred_fallthru
      _
    // Predicated region
    $region14: #{decoder_forward.1} parent=1 // pred_check
      _
    $region15: #{decoder_forward.1} parent=1 // pred_check_branch
      %30 = sbr.rel (0) target = $region17
    $region16: #{decoder_forward.1} parent=1 // pred_region
      _
    $region17: #{decoder_forward.1} parent=1 // pred_fallthru
      _
    // Predicated region
    $region18: #{decoder_forward.1} parent=1 // pred_check
      _
    $region19: #{decoder_forward.1} parent=1 // pred_check_branch
      %32 = sbr.rel (0) target = $region21
    $region20: #{decoder_forward.1} parent=1 // pred_region
      _
    $region21: #{decoder_forward.1} parent=1 // pred_fallthru
      _
    // Predicated region
    $region22: #{decoder_forward.1} parent=1 // pred_check
      _
    $region23: #{decoder_forward.1} parent=1 // pred_check_branch
      %34 = sbr.rel (0) target = $region25
    $region24: #{decoder_forward.1} parent=1 // pred_region
      %36 = dma.done [#allocation3], 6144
    $region25: #{decoder_forward.1} parent=1 // pred_fallthru
      _
    %v37 = vld [vmem:[%s0] sm:$0xff]
    %v38 = vld [vmem:[%s0 + $0x8] sm:$0xff]
    %v39 = vld [vmem:[%s0 + $0x10] sm:$0xff]
    %v40 = vld [vmem:[#allocation2] sm:$0xf]
    %v41 = vld [vmem:[#allocation2 + $0x4] sm:$0xf]
    %v42 = vld [vmem:[#allocation2 + $0x8] sm:$0xf]
    %v43 = vld [vmem:[#allocation2 + $0xc] sm:$0xf]
    %v44 = vld [vmem:[#allocation2 + $0x10] sm:$0xf]
    %v45 = vld [vmem:[#allocation2 + $0x14] sm:$0xf]
    %v46 = vld [vmem:[#allocation2 + $0x18] sm:$0xf]
    %v47 = vld [vmem:[#allocation2 + $0x1c] sm:$0xf]
    %v48 = vld [vmem:[#allocation2 + $0x20] sm:$0xf]
    %v49 = vld [vmem:[#allocation2 + $0x24] sm:$0xf]
    %v50 = vld [vmem:[#allocation2 + $0x28] sm:$0xf]
    %v51 = vld [vmem:[#allocation2 + $0x2c] sm:$0xf]
    %v52 = vld [vmem:[#allocation2 + $0x30] sm:$0xf]
    %v53 = vld [vmem:[#allocation2 + $0x34] sm:$0xf]
    %v54 = vld [vmem:[#allocation2 + $0x38] sm:$0xf]
    %v55 = vld [vmem:[#allocation2 + $0x3c] sm:$0xf]
    %v56 = vld [vmem:[#allocation2 + $0x40] sm:$0xf]
    %v57 = vld [vmem:[#allocation2 + $0x44] sm:$0xf]
    %v58 = vld [vmem:[#allocation2 + $0x48] sm:$0xf]
    %v59 = vld [vmem:[#allocation2 + $0x4c] sm:$0xf]
    %v60 = vld [vmem:[#allocation2 + $0x50] sm:$0xf]
    %v61 = vld [vmem:[#allocation2 + $0x54] sm:$0xf]
    %v62 = vld [vmem:[#allocation2 + $0x58] sm:$0xf]
    %v63 = vld [vmem:[#allocation2 + $0x5c] sm:$0xf]
    %v64 = vld [vmem:[#allocation2 + $0x60] sm:$0xf]
    %v65 = vld [vmem:[#allocation2 + $0x64] sm:$0xf]
    %v66 = vld [vmem:[#allocation2 + $0x68] sm:$0xf]
    %v67 = vld [vmem:[#allocation2 + $0x6c] sm:$0xf]
    %v68 = vld [vmem:[#allocation2 + $0x70] sm:$0xf]
    %v69 = vld [vmem:[#allocation2 + $0x74] sm:$0xf]
    %v70 = vld [vmem:[#allocation2 + $0x78] sm:$0xf]
    %v71 = vld [vmem:[#allocation2 + $0x7c] sm:$0xf]
    %v72 = vld [vmem:[#allocation2 + $0x80] sm:$0xf]
    %v73 = vld [vmem:[#allocation2 + $0x84] sm:$0xf]
    %v74 = vld [vmem:[#allocation2 + $0x88] sm:$0xf]
    %v75 = vld [vmem:[#allocation2 + $0x8c] sm:$0xf]
    %v76 = vld [vmem:[#allocation2 + $0x90] sm:$0xf]
    %v77 = vld [vmem:[#allocation2 + $0x94] sm:$0xf]
    %v78 = vld [vmem:[#allocation2 + $0x98] sm:$0xf]
    %v79 = vld [vmem:[#allocation2 + $0x9c] sm:$0xf]
    %v80 = vld [vmem:[#allocation2 + $0xa0] sm:$0xf]
    %v81 = vld [vmem:[#allocation2 + $0xa4] sm:$0xf]
    %v82 = vld [vmem:[#allocation2 + $0xa8] sm:$0xf]
    %v83 = vld [vmem:[#allocation2 + $0xac] sm:$0xf]
    %v84 = vld [vmem:[#allocation2 + $0xb0] sm:$0xf]
    %v85 = vld [vmem:[#allocation2 + $0xb4] sm:$0xf]
    %v86 = vld [vmem:[#allocation2 + $0xb8] sm:$0xf]
    %v87 = vld [vmem:[#allocation2 + $0xbc] sm:$0xf]
    %v88 = vld [vmem:[#allocation2 + $0xc0] sm:$0xf]
    %v89 = vld [vmem:[#allocation2 + $0xc4] sm:$0xf]
    %v90 = vld [vmem:[#allocation2 + $0xc8] sm:$0xf]
    %v91 = vld [vmem:[#allocation2 + $0xcc] sm:$0xf]
    %v92 = vld [vmem:[#allocation2 + $0xd0] sm:$0xf]
    %v93 = vld [vmem:[#allocation2 + $0xd4] sm:$0xf]
    %v94 = vld [vmem:[#allocation2 + $0xd8] sm:$0xf]
    %v95 = vld [vmem:[#allocation2 + $0xdc] sm:$0xf]
    %v96 = vld [vmem:[#allocation2 + $0xe0] sm:$0xf]
    %v97 = vld [vmem:[#allocation2 + $0xe4] sm:$0xf]
    %v98 = vld [vmem:[#allocation2 + $0xe8] sm:$0xf]
    %v99 = vld [vmem:[#allocation2 + $0xec] sm:$0xf]
    %v100 = vld [vmem:[#allocation2 + $0xf0] sm:$0xf]
    %v101 = vld [vmem:[#allocation2 + $0xf4] sm:$0xf]
    %v102 = vld [vmem:[#allocation2 + $0xf8] sm:$0xf]
    %v103 = vld [vmem:[#allocation2 + $0xfc] sm:$0xf]
    %v104 = vld [vmem:[#allocation2 + $0x100] sm:$0xf]
    %v105 = vld [vmem:[#allocation2 + $0x104] sm:$0xf]
    %v106 = vld [vmem:[#allocation2 + $0x108] sm:$0xf]
    %v107 = vld [vmem:[#allocation2 + $0x10c] sm:$0xf]
    %v108 = vld [vmem:[#allocation2 + $0x110] sm:$0xf]
    %v109 = vld [vmem:[#allocation2 + $0x114] sm:$0xf]
    %v110 = vld [vmem:[#allocation2 + $0x118] sm:$0xf]
    %v111 = vld [vmem:[#allocation2 + $0x11c] sm:$0xf]
    %v112 = vld [vmem:[#allocation2 + $0x120] sm:$0xf]
    %v113 = vld [vmem:[#allocation2 + $0x124] sm:$0xf]
    %v114 = vld [vmem:[#allocation2 + $0x128] sm:$0xf]
    %v115 = vld [vmem:[#allocation2 + $0x12c] sm:$0xf]
    %v116 = vld [vmem:[#allocation2 + $0x130] sm:$0xf]
    %v117 = vld [vmem:[#allocation2 + $0x134] sm:$0xf]
    %v118 = vld [vmem:[#allocation2 + $0x138] sm:$0xf]
    %v119 = vld [vmem:[#allocation2 + $0x13c] sm:$0xf]
    %v120 = vld [vmem:[#allocation2 + $0x140] sm:$0xf]
    %v121 = vld [vmem:[#allocation2 + $0x144] sm:$0xf]
    %v122 = vld [vmem:[#allocation2 + $0x148] sm:$0xf]
    %v123 = vld [vmem:[#allocation2 + $0x14c] sm:$0xf]
    %v124 = vld [vmem:[#allocation2 + $0x150] sm:$0xf]
    %v125 = vld [vmem:[#allocation2 + $0x154] sm:$0xf]
    %v126 = vld [vmem:[#allocation2 + $0x158] sm:$0xf]
    %v127 = vld [vmem:[#allocation2 + $0x15c] sm:$0xf]
    %v128 = vld [vmem:[#allocation2 + $0x160] sm:$0xf]
    %v129 = vld [vmem:[#allocation2 + $0x164] sm:$0xf]
    %v130 = vld [vmem:[#allocation2 + $0x168] sm:$0xf]
    %v131 = vld [vmem:[#allocation2 + $0x16c] sm:$0xf]
    %v132 = vld [vmem:[#allocation2 + $0x170] sm:$0xf]
    %v133 = vld [vmem:[#allocation2 + $0x174] sm:$0xf]
    %v134 = vld [vmem:[#allocation2 + $0x178] sm:$0xf]
    %v135 = vld [vmem:[#allocation2 + $0x17c] sm:$0xf]
    %v136 = vld [vmem:[%s2] sm:$0x1]
    %v138 = vperm.slane %v136, 0
    %v143 = vunpack.c.l.b16 %v37
    %v144 = vunpack.c.h.b16 %v37
    %v145 = vunpack.c.l.b16 %v38
    %v146 = vunpack.c.h.b16 %v38
    %v147 = vunpack.c.l.b16 %v39
    %v148 = vunpack.c.h.b16 %v39
    %v149 = vpack.c.b16 %v143, %v143
    %v150 = vpack.c.b16 %v144, %v144
    %v151 = vpack.c.b16 %v145, %v145
    %v152 = vpack.c.b16 %v146, %v146
    %v153 = vpack.c.b16 %v147, %v147
    %v154 = vpack.c.b16 %v148, %v148
    %v257 = vunpack.c.l.b16 %v40
    %v258 = vunpack.c.l.b16 %v41
    %v259 = vunpack.c.l.b16 %v42
    %v260 = vunpack.c.l.b16 %v43
    %v261 = vunpack.c.l.b16 %v44
    %v262 = vunpack.c.l.b16 %v45
    %v263 = vunpack.c.l.b16 %v46
    %v264 = vunpack.c.l.b16 %v47
    %v265 = vunpack.c.l.b16 %v48
    %v266 = vunpack.c.l.b16 %v49
    %v267 = vunpack.c.l.b16 %v50
    %v268 = vunpack.c.l.b16 %v51
    %v269 = vunpack.c.l.b16 %v52
    %v270 = vunpack.c.l.b16 %v53
    %v271 = vunpack.c.l.b16 %v54
    %v272 = vunpack.c.l.b16 %v55
    %v273 = vunpack.c.l.b16 %v56
    %v274 = vunpack.c.l.b16 %v57
    %v275 = vunpack.c.l.b16 %v58
    %v276 = vunpack.c.l.b16 %v59
    %v277 = vunpack.c.l.b16 %v60
    %v278 = vunpack.c.l.b16 %v61
    %v279 = vunpack.c.l.b16 %v62
    %v280 = vunpack.c.l.b16 %v63
    %v281 = vunpack.c.l.b16 %v64
    %v282 = vunpack.c.l.b16 %v65
    %v283 = vunpack.c.l.b16 %v66
    %v284 = vunpack.c.l.b16 %v67
    %v285 = vunpack.c.l.b16 %v68
    %v286 = vunpack.c.l.b16 %v69
    %v287 = vunpack.c.l.b16 %v70
    %v288 = vunpack.c.l.b16 %v71
    %v289 = vunpack.c.l.b16 %v72
    %v290 = vunpack.c.l.b16 %v73
    %v291 = vunpack.c.l.b16 %v74
    %v292 = vunpack.c.l.b16 %v75
    %v293 = vunpack.c.l.b16 %v76
    %v294 = vunpack.c.l.b16 %v77
    %v295 = vunpack.c.l.b16 %v78
    %v296 = vunpack.c.l.b16 %v79
    %v297 = vunpack.c.l.b16 %v80
    %v298 = vunpack.c.l.b16 %v81
    %v299 = vunpack.c.l.b16 %v82
    %v300 = vunpack.c.l.b16 %v83
    %v301 = vunpack.c.l.b16 %v84
    %v302 = vunpack.c.l.b16 %v85
    %v303 = vunpack.c.l.b16 %v86
    %v304 = vunpack.c.l.b16 %v87
    %v305 = vunpack.c.l.b16 %v88
    %v306 = vunpack.c.l.b16 %v89
    %v307 = vunpack.c.l.b16 %v90
    %v308 = vunpack.c.l.b16 %v91
    %v309 = vunpack.c.l.b16 %v92
    %v310 = vunpack.c.l.b16 %v93
    %v311 = vunpack.c.l.b16 %v94
    %v312 = vunpack.c.l.b16 %v95
    %v313 = vunpack.c.l.b16 %v96
    %v314 = vunpack.c.l.b16 %v97
    %v315 = vunpack.c.l.b16 %v98
    %v316 = vunpack.c.l.b16 %v99
    %v317 = vunpack.c.l.b16 %v100
    %v318 = vunpack.c.l.b16 %v101
    %v319 = vunpack.c.l.b16 %v102
    %v320 = vunpack.c.l.b16 %v103
    %v321 = vunpack.c.l.b16 %v104
    %v322 = vunpack.c.l.b16 %v105
    %v323 = vunpack.c.l.b16 %v106
    %v324 = vunpack.c.l.b16 %v107
    %v325 = vunpack.c.l.b16 %v108
    %v326 = vunpack.c.l.b16 %v109
    %v327 = vunpack.c.l.b16 %v110
    %v328 = vunpack.c.l.b16 %v111
    %v329 = vunpack.c.l.b16 %v112
    %v330 = vunpack.c.l.b16 %v113
    %v331 = vunpack.c.l.b16 %v114
    %v332 = vunpack.c.l.b16 %v115
    %v333 = vunpack.c.l.b16 %v116
    %v334 = vunpack.c.l.b16 %v117
    %v335 = vunpack.c.l.b16 %v118
    %v336 = vunpack.c.l.b16 %v119
    %v337 = vunpack.c.l.b16 %v120
    %v338 = vunpack.c.l.b16 %v121
    %v339 = vunpack.c.l.b16 %v122
    %v340 = vunpack.c.l.b16 %v123
    %v341 = vunpack.c.l.b16 %v124
    %v342 = vunpack.c.l.b16 %v125
    %v343 = vunpack.c.l.b16 %v126
    %v344 = vunpack.c.l.b16 %v127
    %v345 = vunpack.c.l.b16 %v128
    %v346 = vunpack.c.l.b16 %v129
    %v347 = vunpack.c.l.b16 %v130
    %v348 = vunpack.c.l.b16 %v131
    %v349 = vunpack.c.l.b16 %v132
    %v350 = vunpack.c.l.b16 %v133
    %v351 = vunpack.c.l.b16 %v134
    %v352 = vunpack.c.l.b16 %v135
    %v353 = vpack.c.b16 %v258, %v257
    %v354 = vpack.c.b16 %v260, %v259
    %v355 = vpack.c.b16 %v262, %v261
    %v356 = vpack.c.b16 %v264, %v263
    %v357 = vpack.c.b16 %v266, %v265
    %v358 = vpack.c.b16 %v268, %v267
    %v359 = vpack.c.b16 %v270, %v269
    %v360 = vpack.c.b16 %v272, %v271
    %v361 = vpack.c.b16 %v274, %v273
    %v362 = vpack.c.b16 %v276, %v275
    %v363 = vpack.c.b16 %v278, %v277
    %v364 = vpack.c.b16 %v280, %v279
    %v365 = vpack.c.b16 %v282, %v281
    %v366 = vpack.c.b16 %v284, %v283
    %v367 = vpack.c.b16 %v286, %v285
    %v368 = vpack.c.b16 %v288, %v287
    %v369 = vpack.c.b16 %v290, %v289
    %v370 = vpack.c.b16 %v292, %v291
    %v371 = vpack.c.b16 %v294, %v293
    %v372 = vpack.c.b16 %v296, %v295
    %v373 = vpack.c.b16 %v298, %v297
    %v374 = vpack.c.b16 %v300, %v299
    %v375 = vpack.c.b16 %v302, %v301
    %v376 = vpack.c.b16 %v304, %v303
    %v377 = vpack.c.b16 %v306, %v305
    %v378 = vpack.c.b16 %v308, %v307
    %v379 = vpack.c.b16 %v310, %v309
    %v380 = vpack.c.b16 %v312, %v311
    %v381 = vpack.c.b16 %v314, %v313
    %v382 = vpack.c.b16 %v316, %v315
    %v383 = vpack.c.b16 %v318, %v317
    %v384 = vpack.c.b16 %v320, %v319
    %v385 = vpack.c.b16 %v322, %v321
    %v386 = vpack.c.b16 %v324, %v323
    %v387 = vpack.c.b16 %v326, %v325
    %v388 = vpack.c.b16 %v328, %v327
    %v389 = vpack.c.b16 %v330, %v329
    %v390 = vpack.c.b16 %v332, %v331
    %v391 = vpack.c.b16 %v334, %v333
    %v392 = vpack.c.b16 %v336, %v335
    %v393 = vpack.c.b16 %v338, %v337
    %v394 = vpack.c.b16 %v340, %v339
    %v395 = vpack.c.b16 %v342, %v341
    %v396 = vpack.c.b16 %v344, %v343
    %v397 = vpack.c.b16 %v346, %v345
    %v398 = vpack.c.b16 %v348, %v347
    %v399 = vpack.c.b16 %v350, %v349
    %v400 = vpack.c.b16 %v352, %v351
    %449 = vmatpush.bf16.msra.mxu0 %v360
    %450 = vmatpush.bf16.msra.mxu0 %v359
    %451 = vmatpush.bf16.msra.mxu0 %v358
    %452 = vmatpush.bf16.msra.mxu0 %v357
    %453 = vmatpush.bf16.msra.mxu0 %v356
    %454 = vmatpush.bf16.msra.mxu0 %v355
    %455 = vmatpush.bf16.msra.mxu0 %v354
    %456 = vmatpush.bf16.msra.mxu0 %v353
    %457 = vmatmul.bf16.gmra.mxu0 %v149
    %v458 = vpop.f32.mrf.mxu0
    %v459 = vadd.f32 %v138, %v458
    %v460 = vpop.f32.mrf.mxu0
    %461 = vdwg.mxu0
    %462 = vmatpush.bf16.msra.mxu0 %v368
    %463 = vmatpush.bf16.msra.mxu0 %v367
    %464 = vmatpush.bf16.msra.mxu0 %v366
    %465 = vmatpush.bf16.msra.mxu0 %v365
    %466 = vmatpush.bf16.msra.mxu0 %v364
    %467 = vmatpush.bf16.msra.mxu0 %v363
    %468 = vmatpush.bf16.msra.mxu0 %v362
    %469 = vmatpush.bf16.msra.mxu0 %v361
    %470 = vmatmul.bf16.gmra.mxu0 %v150
    %v471 = vpop.f32.mrf.mxu0
    %v472 = vadd.f32 %v459, %v471
    %v473 = vpop.f32.mrf.mxu0
    %474 = vdwg.mxu0
    %475 = vmatpush.bf16.msra.mxu0 %v376
    %476 = vmatpush.bf16.msra.mxu0 %v375
    %477 = vmatpush.bf16.msra.mxu0 %v374
    %478 = vmatpush.bf16.msra.mxu0 %v373
    %479 = vmatpush.bf16.msra.mxu0 %v372
    %480 = vmatpush.bf16.msra.mxu0 %v371
    %481 = vmatpush.bf16.msra.mxu0 %v370
    %482 = vmatpush.bf16.msra.mxu0 %v369
    %483 = vmatmul.bf16.gmra.mxu0 %v151
    %v484 = vpop.f32.mrf.mxu0
    %v485 = vadd.f32 %v472, %v484
    %v486 = vpop.f32.mrf.mxu0
    %487 = vdwg.mxu0
    %488 = vmatpush.bf16.msra.mxu0 %v384
    %489 = vmatpush.bf16.msra.mxu0 %v383
    %490 = vmatpush.bf16.msra.mxu0 %v382
    %491 = vmatpush.bf16.msra.mxu0 %v381
    %492 = vmatpush.bf16.msra.mxu0 %v380
    %493 = vmatpush.bf16.msra.mxu0 %v379
    %494 = vmatpush.bf16.msra.mxu0 %v378
    %495 = vmatpush.bf16.msra.mxu0 %v377
    %496 = vmatmul.bf16.gmra.mxu0 %v152
    %v497 = vpop.f32.mrf.mxu0
    %v498 = vadd.f32 %v485, %v497
    %v499 = vpop.f32.mrf.mxu0
    %500 = vdwg.mxu0
    %501 = vmatpush.bf16.msra.mxu0 %v392
    %502 = vmatpush.bf16.msra.mxu0 %v391
    %503 = vmatpush.bf16.msra.mxu0 %v390
    %504 = vmatpush.bf16.msra.mxu0 %v389
    %505 = vmatpush.bf16.msra.mxu0 %v388
    %506 = vmatpush.bf16.msra.mxu0 %v387
    %507 = vmatpush.bf16.msra.mxu0 %v386
    %508 = vmatpush.bf16.msra.mxu0 %v385
    %509 = vmatmul.bf16.gmra.mxu0 %v153
    %v510 = vpop.f32.mrf.mxu0
    %v511 = vadd.f32 %v498, %v510
    %v512 = vpop.f32.mrf.mxu0
    %513 = vdwg.mxu0
    %514 = vmatpush.bf16.msra.mxu0 %v400
    %515 = vmatpush.bf16.msra.mxu0 %v399
    %516 = vmatpush.bf16.msra.mxu0 %v398
    %517 = vmatpush.bf16.msra.mxu0 %v397
    %518 = vmatpush.bf16.msra.mxu0 %v396
    %519 = vmatpush.bf16.msra.mxu0 %v395
    %520 = vmatpush.bf16.msra.mxu0 %v394
    %521 = vmatpush.bf16.msra.mxu0 %v393
    %522 = vmatmul.bf16.gmra.mxu0 %v154
    %v523 = vpop.f32.mrf.mxu0
    %v524 = vadd.f32 %v511, %v523
    %v525 = vpop.f32.mrf.mxu0
    %526 = vdwg.mxu0
    %v527 = vmax.f32 %v524, 0.0
    %v529 = vrot.slane %v527, 2
    %v531 = vmax.f32 %v527, %v529
    %533 = vrot.lane.b32.xlu0 %v531, 96
    %v534 = vpop.permute.xlu0 %533
    %v536 = vmax.f32 %v531, %v534
    %538 = vrot.lane.b32.xlu0 %v536, 96
    %v539 = vpop.permute.xlu0 %538
    %v541 = vrot.slane %v536, 4
    %542 = vrot.lane.b32.xlu0 %v541, 64
    %v543 = vpop.permute.xlu0 %542
    %545 = vrot.lane.b32.xlu0 %v541, 32
    %v546 = vpop.permute.xlu0 %545
    %vm548 = vcmask 261120
    %v549 = vsel %vm548, %v536, %v539
    %vm550 = vcmask 523264
    %v551 = vsel %vm550, %v549, %v543
    %vm552 = vcmask 785408
    %v553 = vsel %vm552, %v551, %v546
    %v554 = vld [vmem:[%s3] sm:$0xff]
    %v555 = vld [vmem:[%s3 + $0x8] sm:$0xff]
    %v556 = vld [vmem:[%s3 + $0x10] sm:$0xff]
    %v557 = vld [vmem:[%s3 + $0x18] sm:$0xff]
    %v558 = vld [vmem:[%s3 + $0x20] sm:$0xff]
    %v559 = vld [vmem:[%s3 + $0x28] sm:$0xff]
    %v560 = vld [vmem:[%s3 + $0x30] sm:$0xff]
    %v561 = vld [vmem:[%s3 + $0x38] sm:$0xff]
    %v562 = vld [vmem:[%s3 + $0x40] sm:$0xff]
    %v563 = vld [vmem:[%s3 + $0x48] sm:$0xff]
    %v564 = vld [vmem:[%s3 + $0x50] sm:$0xff]
    %v565 = vld [vmem:[%s3 + $0x58] sm:$0xff]
    %v566 = vld [vmem:[%s3 + $0x60] sm:$0xff]
    %v567 = vld [vmem:[%s3 + $0x68] sm:$0xff]
    %v568 = vld [vmem:[%s3 + $0x70] sm:$0xff]
    %v569 = vld [vmem:[%s3 + $0x78] sm:$0xff]
    %v570 = vld [vmem:[%s4] sm:$0x1]
    %v572 = vperm.slane %v570, 0
    %574 = vmatpush.msra.mxu0 %v569
    %575 = vmatpush.msra.mxu0 %v568
    %576 = vmatpush.msra.mxu0 %v567
    %577 = vmatpush.msra.mxu0 %v566
    %578 = vmatpush.msra.mxu0 %v565
    %579 = vmatpush.msra.mxu0 %v564
    %580 = vmatpush.msra.mxu0 %v563
    %581 = vmatpush.msra.mxu0 %v562
    %582 = vmatpush.msra.mxu0 %v561
    %583 = vmatpush.msra.mxu0 %v560
    %584 = vmatpush.msra.mxu0 %v559
    %585 = vmatpush.msra.mxu0 %v558
    %586 = vmatpush.msra.mxu0 %v557
    %587 = vmatpush.msra.mxu0 %v556
    %588 = vmatpush.msra.mxu0 %v555
    %589 = vmatpush.msra.mxu0 %v554
    %590 = vmatmul.f32.gmra.mxu0 %v553
    %v591 = vpop.f32.mrf.mxu0
    %v592 = vadd.f32 %v572, %v591
    %593 = vdwg.mxu0
    %vm594 = vcmask 9216
    %595 = vst.msk [vmem:[#allocation5] sm:$0x3] %vm594, %v592
    // Predicated region
    $region26: #{decoder_forward.1} parent=1 // pred_check
      _
    $region27: #{decoder_forward.1} parent=1 // pred_check_branch
      %597 = sbr.rel (0) target = $region29
    $region28: #{decoder_forward.1} parent=1 // pred_region
      %599 = vsyncadd [#allocation4], 0
      %s601 = sshll.u32 [#allocation5], 4
      %s602 = int_to_ptr.vmem [resolvable:$true] %s601
      %s603 = sshll.u32 %s5, 4
      %s604 = int_to_ptr.hbm [resolvable:$true] %s603
      %606 = dma.vmem_to_hbm [thread:$0]  %s602, 32, %s604, [#allocation4]
    $region29: #{decoder_forward.1} parent=1 // pred_fallthru
      _
    // Predicated region
    $region30: #{decoder_forward.1} parent=1 // pred_check
      _
    $region31: #{decoder_forward.1} parent=1 // pred_check_branch
      %608 = sbr.rel (0) target = $region33
    $region32: #{decoder_forward.1} parent=1 // pred_region
      %610 = dma.done [#allocation4], 32
    $region33: #{decoder_forward.1} parent=1 // pred_fallthru
      _
    %611 = vsyncpa [#allocation3], 1
    %612 = vsyncpa [#allocation4], 1

</llo_original>
